<compile_context>
chip_gen: v7x
topology: tpu7x:2x2x1
jax: 0.10.0
libtpu: 0.0.40
codegen_flags: <defaults>
</compile_context>

<pallas_src>
from functools import partial

import jax
import jax.numpy as jnp
from jax.experimental import pallas as pl
from jax.experimental.pallas import tpu as pltpu

ALPHA = 0.25
GAMMA = 2.0  # gamma fixed at 2 -> (1-pt)^2 computed as d*d / jnp.square below
LANES = 128


def _round_up(x, m):
    return ((x + m - 1) // m) * m


def _sublane_align(*dtypes):
    # Minimum legal second-minor tile rows: f32 -> 8, bf16 -> 16, int8/bool -> 32.
    a = 8
    for dt in dtypes:
        a = max(a, 32 // max(1, jnp.dtype(dt).itemsize))
    return a


def _default_num_cores():
    # 2 TensorCores per device on megacore chips (v4 / v5p / v7x); 1 on v5e/v6e.
    try:
        kind = jax.devices()[0].device_kind.lower()
    except Exception:
        return 1
    if "v5e" in kind or "v6" in kind or "lite" in kind:
        return 1
    if "v7" in kind or "v5p" in kind or "v4" in kind:
        return 2
    return 1


def _focal_elementwise_ref(p, t):
    """General (soft-target capable) per-element focal loss, torch-BCE semantics."""
    log_p = jnp.maximum(jnp.log(p), -100.0)
    log_1mp = jnp.maximum(jnp.log(1.0 - p), -100.0)
    bce = -(t * log_p + (1.0 - t) * log_1mp)
    pt = jnp.exp(-bce)
    at = ALPHA * t + (1.0 - ALPHA) * (1.0 - t)
    return at * jnp.square(1.0 - pt) * bce


def _focal_loss_kernel(x_ref, t_ref, out_ref, *, binary_targets, tm, steps, rows,
                       needs_mask):
    # out_ref block is (1, 8, LANES), resident across the reduction axis (axis 1).
    @pl.when(pl.program_id(1) == 0)
    def _():
        out_ref[...] = jnp.zeros_like(out_ref)

    p = x_ref[...].astype(jnp.float32)
    t = t_ref[...].astype(jnp.float32)

    if needs_mask:
        # Zero out rows beyond the real row count (partial last block and any
        # duplicated trailing steps). p=0, t=0 contributes exactly 0 below.
        base = (pl.program_id(0) * steps + pl.program_id(1)) * tm
        row_ids = base + jax.lax.broadcasted_iota(jnp.int32, (tm, LANES), 0)
        valid = row_ids < rows
        p = jnp.where(valid, p, 0.0)
        t = jnp.where(valid, t, 0.0)

    if binary_targets:
        # Identities for t in {0,1}:
        #   d = p - t,  pt = 1 - |d|,  (1-pt)^gamma = d*d (gamma==2),
        #   at = (1-alpha) - (1-2*alpha)*t = 0.75 - 0.5*t
        #   bce = min(-log(pt), 100)   (== torch's log clamp at -100)
        d = p - t
        d2 = d * d
        pt = 1.0 - jnp.abs(d)
        bce = jnp.minimum(-jnp.log(pt), 100.0)
        at = (1.0 - ALPHA) - (1.0 - 2.0 * ALPHA) * t
        f_loss = at * d2 * bce
    else:
        # General (soft-target) path; matches torch BCE exactly.
        log_p = jnp.maximum(jnp.log(p), -100.0)
        log_1mp = jnp.maximum(jnp.log(1.0 - p), -100.0)
        bce = -(t * log_p + (1.0 - t) * log_1mp)
        pt = jnp.exp(-bce)
        at = ALPHA * t + (1.0 - ALPHA) * (1.0 - t)
        f_loss = at * jnp.square(1.0 - pt) * bce

    # Full-vreg accumulate: group rows into (tm//8, 8, LANES) and sum the leading
    # axis with plain vreg adds (no XLU sublane reduce, no sub-vreg RMW on the
    # resident output block). Final cross-lane/sublane reduce happens outside.
    out_ref[...] += f_loss.reshape(tm // 8, 8, LANES).sum(axis=0)[None]


def focal_loss(inputs, targets, *, reduction="mean", row_tile=2048,
               num_cores=None, binary_targets=True):
    """Focal loss (alpha=0.25, gamma=2.0).

    Contract:
      * `inputs` are probabilities in (0, 1) (post-sigmoid); any float dtype.
        bf16 inputs are recommended — this kernel is HBM-bound, so narrow input
        dtypes are the biggest throughput lever (the kernel casts to f32 in VMEM).
      * `targets` must be {0, 1} labels when binary_targets=True (default, fast
        single-log path). For soft targets pass binary_targets=False.
      * reduction: 'mean' or 'sum'.
    """
    assert inputs.shape == targets.shape
    if reduction not in ("mean", "sum"):
        # TODO(synk): reduction='none' needs the full elementwise map output;
        # only 'mean'/'sum' go through this reduction kernel.
        raise NotImplementedError("reduction='none' not supported by this kernel")

    n = inputs.size
    x_flat = inputs.reshape(-1)
    t_flat = targets.reshape(-1)
    rows = n // LANES
    n_main = rows * LANES
    align = _sublane_align(inputs.dtype, targets.dtype)
    if num_cores is None:
        num_cores = _default_num_cores()

    # Ragged (<128-element) tail: trivial, compute in plain JAX. This keeps the
    # kernel path completely free of pad materialization when n % 128 == 0.
    tail_sum = jnp.float32(0.0)
    if n_main < n:
        tail_sum = jnp.sum(_focal_elementwise_ref(
            x_flat[n_main:].astype(jnp.float32),
            t_flat[n_main:].astype(jnp.float32))).astype(jnp.float32)

    if rows < align:
        # Tiny input (not even one aligned row tile): plain JAX.
        main_sum = jnp.float32(0.0)
        if rows > 0:
            main_sum = jnp.sum(_focal_elementwise_ref(
                x_flat[:n_main].astype(jnp.float32),
                t_flat[:n_main].astype(jnp.float32))).astype(jnp.float32)
        total = main_sum + tail_sum
        return total / jnp.float32(n) if reduction == "mean" else total

    # No jnp.pad: when n % 128 == 0 these reshapes are free (no extra HBM pass).
    if n_main < n:
        x2 = x_flat[:n_main].reshape(rows, LANES)
        t2 = t_flat[:n_main].reshape(rows, LANES)
    else:
        x2 = x_flat.reshape(rows, LANES)
        t2 = t_flat.reshape(rows, LANES)

    # Core split only when each core gets meaningful work.
    P = num_cores if rows >= num_cores * 2 * align else 1
    # Row tile: multiple of `align`, never larger than the array, tracks `rows`
    # (no ~2x padding cliff from rounding to P*row_tile).
    tm_cap = (rows // align) * align
    tm = min(_round_up(int(row_tile), align), tm_cap,
             _round_up(pl.cdiv(rows, P), align))
    nblocks = pl.cdiv(rows, tm)          # real number of row blocks in the array
    steps = pl.cdiv(nblocks, P)          # steps per core
    needs_mask = (P * steps * tm != rows)
    last_block = nblocks - 1

    def in_map(c, i):
        # Clamp so duplicated trailing steps (when nblocks % P != 0) stay
        # in-bounds; their contribution is zeroed by the in-kernel row mask.
        return (jnp.minimum(c * steps + i, last_block), 0)

    kernel = partial(_focal_loss_kernel, binary_targets=binary_targets,
                     tm=tm, steps=steps, rows=rows, needs_mask=needs_mask)

    itemsize = x2.dtype.itemsize + t2.dtype.itemsize
    cost = pl.CostEstimate(
        flops=12 * rows * LANES,
        transcendentals=rows * LANES,
        bytes_accessed=rows * LANES * itemsize + P * 8 * LANES * 4,
    )

    partials = pl.pallas_call(
        kernel,
        out_shape=jax.ShapeDtypeStruct((P, 8, LANES), jnp.float32),
        grid_spec=pltpu.PrefetchScalarGridSpec(
            num_scalar_prefetch=0,
            grid=(P, steps),
            in_specs=[
                pl.BlockSpec((tm, LANES), in_map),
                pl.BlockSpec((tm, LANES), in_map),
            ],
            out_specs=pl.BlockSpec((1, 8, LANES), lambda c, i: (c, 0, 0)),
        ),
        compiler_params=pltpu.CompilerParams(
            dimension_semantics=("parallel", "arbitrary"),
            vmem_limit_bytes=32 * 1024 * 1024,
        ),
        cost_estimate=cost,
    )(x2, t2)

    total = jnp.sum(partials) + tail_sum   # P*8*128 values; trivial final reduce
    if reduction == "mean":
        return total / jnp.float32(n)
    return total


if __name__ == "__main__":
    key = jax.random.PRNGKey(0)
    k1, k2 = jax.random.split(key)

    # NCHW inputs: batch=2, channels=4, spatial=16x16
    shape = (2, 4, 16, 16)
    logits = jax.random.normal(k1, shape, dtype=jnp.float32)
    inputs = jax.nn.sigmoid(logits)                         # probabilities in (0,1)
    targets = (jax.random.uniform(k2, shape) > 0.5).astype(jnp.float32)

    loss = jax.block_until_ready(focal_loss(inputs, targets, reduction="mean"))
    loss_soft = jax.block_until_ready(
        focal_loss(inputs, targets, reduction="mean", binary_targets=False))

    # Pure-JAX reference (PyTorch-equivalent formula).
    ref = jnp.mean(_focal_elementwise_ref(inputs, targets))

    assert jnp.allclose(loss, ref, rtol=1e-5, atol=1e-6), (loss, ref)
    assert jnp.allclose(loss_soft, ref, rtol=1e-5, atol=1e-6), (loss_soft, ref)

    print("KERNEL_OK")
</pallas_src>

<mosaic_0001>
module attributes {stable_mosaic.version = 11 : i64} {
  func.func @_focal_loss_kernel(%arg0: i32, %arg1: i32, %arg2: memref<16x128xf32, #tpu.memory_space<vmem>>, %arg3: memref<16x128xf32, #tpu.memory_space<vmem>>, %arg4: memref<1x8x128xf32, #tpu.memory_space<vmem>>) attributes {dimension_semantics = [#tpu.dimension_semantics<parallel>, #tpu.dimension_semantics<arbitrary>], iteration_bounds = array<i64: 1, 1>, scalar_prefetch = 0 : i64, scratch_operands = 0 : i64, tpu.core_type = #tpu.core_type<tc>, window_params = [{transform_indices = @transform_0, window_bounds = array<i64: 16, 128>}, {transform_indices = @transform_1, window_bounds = array<i64: 16, 128>}, {transform_indices = @transform_2, window_bounds = array<i64: 1, 8, 128>}]} {
    %c0_i32 = arith.constant 0 : i32
    %0 = arith.cmpi eq, %arg1, %c0_i32 : i32
    %1 = arith.extui %0 : i1 to i32
    %c0_i32_0 = arith.constant 0 : i32
    %2 = arith.cmpi ne, %1, %c0_i32_0 : i32
    scf.if %2 {
      %cst_15 = arith.constant 0.000000e+00 : f32
      %27 = vector.broadcast %cst_15 : f32 to vector<1x8x128xf32>
      %c0_16 = arith.constant 0 : index
      %c0_17 = arith.constant 0 : index
      %c0_18 = arith.constant 0 : index
      %28 = vector.load %arg4[%c0_16, %c0_17, %c0_18] : memref<1x8x128xf32, #tpu.memory_space<vmem>>, vector<1x8x128xf32>
      tpu.vector_store %arg4[%c0_16, %c0_17, %c0_18], %27 {strides = array<i32>} : memref<1x8x128xf32, #tpu.memory_space<vmem>>, vector<1x8x128xf32>,
    } else {
    }
    %c0 = arith.constant 0 : index
    %c0_1 = arith.constant 0 : index
    %3 = vector.load %arg2[%c0, %c0_1] : memref<16x128xf32, #tpu.memory_space<vmem>>, vector<16x128xf32>
    %c0_2 = arith.constant 0 : index
    %c0_3 = arith.constant 0 : index
    %4 = vector.load %arg3[%c0_2, %c0_3] : memref<16x128xf32, #tpu.memory_space<vmem>>, vector<16x128xf32>
    %5 = arith.subf %3, %4 : vector<16x128xf32>
    %6 = arith.mulf %5, %5 : vector<16x128xf32>
    %7 = math.absf %5 : vector<16x128xf32>
    %cst = arith.constant 1.000000e+00 : f32
    %8 = vector.broadcast %cst : f32 to vector<16x128xf32>
    %9 = arith.subf %8, %7 : vector<16x128xf32>
    %10 = math.log %9 : vector<16x128xf32>
    %cst_4 = arith.constant 0.000000e+00 : f32
    %11 = vector.broadcast %cst_4 : f32 to vector<16x128xf32>
    %12 = arith.subf %11, %10 : vector<16x128xf32>
    %cst_5 = arith.constant 1.000000e+02 : f32
    %13 = vector.broadcast %cst_5 : f32 to vector<16x128xf32>
    %14 = arith.minimumf %12, %13 : vector<16x128xf32>
    %cst_6 = arith.constant 5.000000e-01 : f32
    %15 = vector.broadcast %cst_6 : f32 to vector<16x128xf32>
    %16 = arith.mulf %15, %4 : vector<16x128xf32>
    %cst_7 = arith.constant 7.500000e-01 : f32
    %17 = vector.broadcast %cst_7 : f32 to vector<16x128xf32>
    %18 = arith.subf %17, %16 : vector<16x128xf32>
    %19 = arith.mulf %18, %6 : vector<16x128xf32>
    %20 = arith.mulf %19, %14 : vector<16x128xf32>
    %c0_8 = arith.constant 0 : index
    %c0_9 = arith.constant 0 : index
    %c0_10 = arith.constant 0 : index
    %21 = vector.load %arg4[%c0_8, %c0_9, %c0_10] : memref<1x8x128xf32, #tpu.memory_space<vmem>>, vector<1x8x128xf32>
    %22 = vector.shape_cast %20 : vector<16x128xf32> to vector<2x8x128xf32>
    %cst_11 = arith.constant dense<0.000000e+00> : vector<8x128xf32>
    %23 = vector.multi_reduction <add>, %22, %cst_11 [0] : vector<2x8x128xf32> to vector<8x128xf32>
    %24 = vector.shape_cast %23 : vector<8x128xf32> to vector<1x8x128xf32>
    %25 = arith.addf %21, %24 : vector<1x8x128xf32>
    %c0_12 = arith.constant 0 : index
    %c0_13 = arith.constant 0 : index
    %c0_14 = arith.constant 0 : index
    %26 = vector.load %arg4[%c0_12, %c0_13, %c0_14] : memref<1x8x128xf32, #tpu.memory_space<vmem>>, vector<1x8x128xf32>
    tpu.vector_store %arg4[%c0_12, %c0_13, %c0_14], %25 {strides = array<i32>} : memref<1x8x128xf32, #tpu.memory_space<vmem>>, vector<1x8x128xf32>,
    return
  }
  func.func @transform_0(%arg0: i32, %arg1: i32) -> (i32, i32) {
    %c1_i32 = arith.constant 1 : i32
    %0 = arith.muli %arg0, %c1_i32 : i32
    %1 = arith.addi %0, %arg1 : i32
    %c0_i32 = arith.constant 0 : i32
    %2 = arith.minsi %1, %c0_i32 : i32
    %c0_i32_0 = arith.constant 0 : i32
    %c0_i32_1 = arith.constant 0 : i32
    return %2, %c0_i32_0 : i32, i32
  }
  func.func @transform_1(%arg0: i32, %arg1: i32) -> (i32, i32) {
    %c1_i32 = arith.constant 1 : i32
    %0 = arith.muli %arg0, %c1_i32 : i32
    %1 = arith.addi %0, %arg1 : i32
    %c0_i32 = arith.constant 0 : i32
    %2 = arith.minsi %1, %c0_i32 : i32
    %c0_i32_0 = arith.constant 0 : i32
    %c0_i32_1 = arith.constant 0 : i32
    return %2, %c0_i32_0 : i32, i32
  }
  func.func @transform_2(%arg0: i32, %arg1: i32) -> (i32, i32, i32) {
    %c0_i32 = arith.constant 0 : i32
    %c0_i32_0 = arith.constant 0 : i32
    %c0_i32_1 = arith.constant 0 : i32
    return %arg0, %c0_i32, %c0_i32_0 : i32, i32, i32
  }
}

</mosaic_0001>

<llo_original>
// kernel: tpu_custom_call.1
$region0: #{tpu_custom_call.1}
  #allocation0 [shape = 'u32[]', space=smem, size = 0x4, offset = 0x4, fixed_abs, tag = 'smem constant byte address 0x4 - core index']
  #allocation1 [shape = 'u32[144,128]{1,0:T(1,128)}', space=vmem, size = 0x12000, scoped, tag = 'internal scratch']
  %s0 = inlined_call_operand.hbm [shape: f32[16,128], index: 0, kind: input, shape index: {}]
  %s1 = inlined_call_operand.hbm [shape: f32[16,128], index: 1, kind: input, shape index: {}]
  %s2 = inlined_call_operand.hbm [shape: f32[1,8,128], index: 2, kind: output, shape index: {}]
  %s3 = sld [smem:[#allocation0]]
  $region30: #{tpu_custom_call.1} parent=0
    _
  %s5 = ssub.s32 1, %s3
  %s6 = scalar_select 0, %s5, %s3
  $region1: #{tpu_custom_call.1} parent=0
    #allocation2 [shape = 'u8[8192]{0}', space=vmem, size = 0x2000, scoped, tag = 'input window, operand 0, single buffered']
    #allocation3 [shape = 's32[1]{0}', space=sflag, size = 0x4, scoped, tag = 'scoped memory for tpu_custom_call.1']
    #allocation4 [shape = 's32[1]{0}', space=sflag, size = 0x4, scoped, tag = 'scoped memory for tpu_custom_call.1']
    #allocation5 [shape = 'u8[8192]{0}', space=vmem, size = 0x2000, scoped, tag = 'input window, operand 1, single buffered']
    #allocation6 [shape = 's32[1]{0}', space=sflag, size = 0x4, scoped, tag = 'scoped memory for tpu_custom_call.1']
    #allocation7 [shape = 'u8[4096]{0}', space=vmem, size = 0x1000, scoped, tag = 'output window, operand 0, single buffered']
    %7 = vsyncpa [#allocation3], 0
    %8 = vsyncpa [#allocation6], 0
    %9 = vsyncpa [#allocation4], 0
    // Predicated region
    $region2: #{tpu_custom_call.1} parent=1 // pred_check
      _
    $region3: #{tpu_custom_call.1} parent=1 // pred_check_branch
      %11 = sbr.rel (0) target = $region5
    $region4: #{tpu_custom_call.1} parent=1 // pred_region
      %s12 = sadd.s32 0, 0
      %p13 = scmp.lt.s32.totalorder %s12, 0
      %s14 = scalar_select %p13, %s12, 0
      %s15 = smul.u32 2, %s14
      %s17 = ssub.s32 256, 256
      %18 = vsyncadd [#allocation3], %s17
      %s19 = smul.addr %s15, 128
      %s20 = scalar_lea.hbm %s0, %s19
      %s21 = sshll.u32 [#allocation2], 4
      %s22 = int_to_ptr.vmem [resolvable:$true] %s21
      %27 = dma.hbm_to_vmem [thread:$0]  %s20, 256, %s22, [#allocation3], 128, 128, 8
    $region5: #{tpu_custom_call.1} parent=1 // pred_fallthru
      _
    // Predicated region
    $region6: #{tpu_custom_call.1} parent=1 // pred_check
      _
    $region7: #{tpu_custom_call.1} parent=1 // pred_check_branch
      %29 = sbr.rel (0) target = $region9
    $region8: #{tpu_custom_call.1} parent=1 // pred_region
      %s30 = sadd.s32 0, 0
      %p31 = scmp.lt.s32.totalorder %s30, 0
      %s32 = scalar_select %p31, %s30, 0
      %s33 = smul.u32 2, %s32
      %s35 = ssub.s32 256, 256
      %36 = vsyncadd [#allocation6], %s35
      %s37 = smul.addr %s33, 128
      %s38 = scalar_lea.hbm %s1, %s37
      %s39 = sshll.u32 [#allocation5], 4
      %s40 = int_to_ptr.vmem [resolvable:$true] %s39
      %45 = dma.hbm_to_vmem [thread:$0]  %s38, 256, %s40, [#allocation6], 128, 128, 8
    $region9: #{tpu_custom_call.1} parent=1 // pred_fallthru
      _
    // Predicated region
    $region10: #{tpu_custom_call.1} parent=1 // pred_check
      _
    $region11: #{tpu_custom_call.1} parent=1 // pred_check_branch
      %47 = sbr.rel (0) target = $region13
    $region12: #{tpu_custom_call.1} parent=1 // pred_region
      %48 = dma.done [#allocation3], 256
    $region13: #{tpu_custom_call.1} parent=1 // pred_fallthru
      _
    // Predicated region
    $region14: #{tpu_custom_call.1} parent=1 // pred_check
      _
    $region15: #{tpu_custom_call.1} parent=1 // pred_check_branch
      %50 = sbr.rel (0) target = $region17
    $region16: #{tpu_custom_call.1} parent=1 // pred_region
      %51 = dma.done [#allocation6], 256
    $region17: #{tpu_custom_call.1} parent=1 // pred_fallthru
      _
    %s52 = sadd.s32 0, 0
    %p53 = scmp.lt.s32.totalorder %s52, 0
    %s54 = scalar_select %p53, %s52, 0
    %s55 = smul.u32 2, %s54
    %s56 = sadd.s32 0, 0
    %p57 = scmp.lt.s32.totalorder %s56, 0
    %s58 = scalar_select %p57, %s56, 0
    %s59 = smul.u32 2, %s58
    %p60 = scmp.eq.s32.totalorder 0, 0
    // Predicated region
    $region18: #{tpu_custom_call.1} parent=1 // pred_check
      %p61 = pneg %p60
    $region19: #{tpu_custom_call.1} parent=1 // pred_check_branch
      %63 = sbr.rel (%p61) target = $region21
    $region20: #{tpu_custom_call.1} parent=1 // pred_region
      %64 = vst [vmem:[#allocation7] sm:$0xff] 0.0
    $region21: #{tpu_custom_call.1} parent=1 // pred_fallthru
      _
    %v65 = vld [vmem:[#allocation2] sm:$0xff]
    %v66 = vld [vmem:[#allocation2 + $0x8] sm:$0xff]
    %v67 = vld [vmem:[#allocation5] sm:$0xff]
    %v68 = vld [vmem:[#allocation5 + $0x8] sm:$0xff]
    %v69 = vsub.f32 %v65, %v67
    %v70 = vsub.f32 %v66, %v68
    %v71 = vmul.f32 %v69, %v69
    %v72 = vmul.f32 %v70, %v70
    %v73 = vand.u32 2147483647, %v69
    %v74 = vand.u32 2147483647, %v70
    %v75 = vsub.f32 1.0, %v73
    %v76 = vsub.f32 1.0, %v74
    %v77 = vlog2.pop %v75
    %v78 = vmul.f32 %v77, 0.6931472
    %v79 = vlog2.pop %v76
    %v80 = vmul.f32 %v79, 0.6931472
    %v81 = vsub.f32 0.0, %v78
    %v82 = vsub.f32 0.0, %v80
    %v83 = vmin.f32 %v81, 100.0
    %v84 = vmin.f32 %v82, 100.0
    %v85 = vmul.f32 %v67, 0.5
    %v86 = vmul.f32 %v68, 0.5
    %v87 = vsub.f32 0.75, %v85
    %v88 = vsub.f32 0.75, %v86
    %v89 = vmul.f32 %v87, %v71
    %v90 = vmul.f32 %v88, %v72
    %v91 = vmul.f32 %v89, %v83
    %v92 = vmul.f32 %v90, %v84
    %v93 = vld [vmem:[#allocation7] sm:$0xff]
    %v94 = vadd.f32 %v91, %v92
    %v95 = vadd.f32 %v93, %v94
    %96 = vst [vmem:[#allocation7] sm:$0xff] %v95
    // Predicated region
    $region22: #{tpu_custom_call.1} parent=1 // pred_check
      _
    $region23: #{tpu_custom_call.1} parent=1 // pred_check_branch
      %98 = sbr.rel (0) target = $region25
    $region24: #{tpu_custom_call.1} parent=1 // pred_region
      %s100 = ssub.s32 128, 128
      %101 = vsyncadd [#allocation4], %s100
      %s103 = sshll.u32 [#allocation7], 4
      %s104 = int_to_ptr.vmem [resolvable:$true] %s103
      %106 = dma.vmem_to_hbm [thread:$0]  %s104, 128, %s2, [#allocation4]
    $region25: #{tpu_custom_call.1} parent=1 // pred_fallthru
      _
    // Predicated region
    $region26: #{tpu_custom_call.1} parent=1 // pred_check
      _
    $region27: #{tpu_custom_call.1} parent=1 // pred_check_branch
      %108 = sbr.rel (0) target = $region29
    $region28: #{tpu_custom_call.1} parent=1 // pred_region
      %109 = dma.done [#allocation4], 128
    $region29: #{tpu_custom_call.1} parent=1 // pred_fallthru
      _
    %110 = vsyncpa [#allocation3], 1
    %111 = vsyncpa [#allocation6], 1
    %112 = vsyncpa [#allocation4], 1

</llo_original>
